<compile_context>
chip_gen: v7x
topology: tpu7x:2x2x1
jax: 0.10.0
libtpu: 0.0.40
codegen_flags: <defaults>
</compile_context>

<pallas_src>
import functools

import jax
import jax.numpy as jnp
from jax.experimental import pallas as pl
from jax.experimental.pallas import tpu as pltpu


def _round_up(x, m):
    return ((x + m - 1) // m) * m


def _choose_block_graphs(G, Np, F, itemsize):
    """Graphs per grid step: multiple of 8 (sublane dense), h block ~<=2 MiB,
    capped so the in-kernel batched matmuls stay small, and >=2 grid steps
    when possible so both v7x TensorCores get work."""
    bytes_per_graph = max(Np * F * itemsize, 1)
    target_block_bytes = 2 * 1024 * 1024
    tg = (target_block_bytes // bytes_per_graph) // 8 * 8
    tg = max(8, min(tg, 64))          # cap: bounded batched-dot unroll / VMEM headroom
    g8 = _round_up(G, 8)
    if g8 >= 16:
        tg = min(tg, max(8, (g8 // 2) // 8 * 8))   # keep >=2 grid steps (megacore)
    return min(tg, g8)


def _readout_kernel(h_ref, w_ref, b_ref, out_ref, *, inv_n):
    # h_ref:   (TG, Np, F)  node features for TG graphs (source dtype)
    # w_ref:   (1, 1, F)    att_fc weight (shared across grid steps)
    # b_ref:   (1, 1)       att_fc bias (SMEM scalar)
    # out_ref: (TG, 1, F)   per-graph readout embedding
    tg, _, f = h_ref.shape
    h = h_ref[...]
    w = jnp.broadcast_to(w_ref[...], (tg, 1, f))
    b = b_ref[0, 0]

    # attention logits: Linear(F, 1) per node, f32 accumulate on the MXU
    scores = jnp.einsum("gkf,gnf->gkn", w, h,
                        preferred_element_type=jnp.float32) + b     # (TG,1,Np)
    # leaky_relu (negative_slope=0.01, PyTorch default) then exp
    a = jnp.where(scores > 0, scores, 0.01 * scores)
    att = jnp.exp(a)                                                # (TG,1,Np) f32

    # attention-weighted node sum on the MXU; h stays in its source dtype
    acc = jnp.einsum("gkn,gnf->gkf", att.astype(h_ref.dtype), h,
                     preferred_element_type=jnp.float32)            # (TG,1,F)
    # dgl.mean_nodes == weighted sum / N   (static 1/N multiply)
    out_ref[...] = (acc * inv_n).astype(out_ref.dtype)


def readout_layer(h, w, b, *, block_graphs=None):
    """h: [G, N, F] node features; w: [1, F]; b: [1]  ->  [G, F]."""
    G, N, F = h.shape

    # Pad node axis to a multiple of 8 (zero rows contribute 0 to the weighted sum).
    Np = _round_up(N, 8)
    if Np != N:
        h = jnp.pad(h, ((0, 0), (0, Np - N), (0, 0)))

    TG = block_graphs or _choose_block_graphs(G, Np, F, h.dtype.itemsize)
    Gp = _round_up(G, TG)
    if Gp != G:
        h = jnp.pad(h, ((0, Gp - G), (0, 0), (0, 0)))   # zero graphs -> zero rows, sliced off

    w3 = w.reshape(1, 1, F).astype(h.dtype)     # pre-shaped: no in-kernel transpose
    b2 = b.reshape(1, 1).astype(jnp.float32)    # scalar -> SMEM

    kernel = functools.partial(_readout_kernel, inv_n=1.0 / float(N))

    out3 = pl.pallas_call(
        kernel,
        out_shape=jax.ShapeDtypeStruct((Gp, 1, F), h.dtype),
        grid_spec=pltpu.PrefetchScalarGridSpec(
            num_scalar_prefetch=0,
            grid=(Gp // TG,),
            in_specs=[
                pl.BlockSpec((TG, Np, F), lambda g: (g, 0, 0)),      # h: TG graphs/step
                pl.BlockSpec((1, 1, F), lambda g: (0, 0, 0)),        # att weight (shared)
                pl.BlockSpec(memory_space=pltpu.MemorySpace.SMEM),   # att bias scalar
            ],
            out_specs=pl.BlockSpec((TG, 1, F), lambda g: (g, 0, 0)),
        ),
        compiler_params=pltpu.CompilerParams(
            dimension_semantics=("parallel",),
            vmem_limit_bytes=32 * 1024 * 1024,
        ),
    )(h, w3, b2)

    # (Gp, 1, F) -> (G, F); squeeze/slice is a cheap XLA op outside the kernel.
    return out3[:G, 0, :]


def _reference(h, w, b):
    scores = jnp.einsum("gnf,f->gn", h, w.reshape(-1)) + b.reshape(())
    a = jnp.where(scores > 0, scores, 0.01 * scores)
    att = jnp.exp(a)[..., None]
    return jnp.sum(att * h, axis=1) / h.shape[1]


if __name__ == "__main__":
    key = jax.random.PRNGKey(0)
    k_h, k_w, k_b = jax.random.split(key, 3)

    G, N, F = 4, 10, 32                     # graphs, nodes/graph, in_features
    h = jax.random.normal(k_h, (G, N, F), dtype=jnp.float32)
    # att_fc = nn.Linear(F, 1): weight [1, F], bias [1]
    w = jax.random.normal(k_w, (1, F), dtype=jnp.float32) * (1.0 / jnp.sqrt(F))
    b = jax.random.normal(k_b, (1,), dtype=jnp.float32) * 0.1

    out = readout_layer(h, w, b)
    jax.block_until_ready(out)

    ref = _reference(h, w, b)
    assert out.shape == (G, F)
    assert jnp.allclose(out, ref, atol=1e-4, rtol=1e-4), "mismatch vs reference"

    print("KERNEL_OK")
</pallas_src>

<mosaic_0001>
module attributes {stable_mosaic.version = 11 : i64} {
  func.func @_readout_kernel(%arg0: i32, %arg1: memref<8x16x32xf32, #tpu.memory_space<vmem>>, %arg2: memref<1x1x32xf32, #tpu.memory_space<vmem>>, %arg3: memref<1x1xf32, #tpu.memory_space<smem>>, %arg4: memref<8x1x32xf32, #tpu.memory_space<vmem>>) attributes {dimension_semantics = [#tpu.dimension_semantics<parallel>], iteration_bounds = array<i64: 1>, scalar_prefetch = 0 : i64, scratch_operands = 0 : i64, tpu.core_type = #tpu.core_type<tc>, window_params = [{transform_indices = @transform_0, window_bounds = array<i64: 8, 16, 32>}, {pipeline_mode = #tpu.pipeline_mode<synchronous>, transform_indices = @transform_1, window_bounds = array<i64: 1, 1, 32>}, {transform_indices = @transform_2, window_bounds = array<i64: 1, 1>}, {transform_indices = @transform_3, window_bounds = array<i64: 8, 1, 32>}]} {
    %c0 = arith.constant 0 : index
    %c0_0 = arith.constant 0 : index
    %c0_1 = arith.constant 0 : index
    %0 = vector.load %arg1[%c0, %c0_0, %c0_1] : memref<8x16x32xf32, #tpu.memory_space<vmem>>, vector<8x16x32xf32>
    %c0_2 = arith.constant 0 : index
    %c0_3 = arith.constant 0 : index
    %c0_4 = arith.constant 0 : index
    %1 = vector.load %arg2[%c0_2, %c0_3, %c0_4] : memref<1x1x32xf32, #tpu.memory_space<vmem>>, vector<1x1x32xf32>
    %2 = vector.shape_cast %1 : vector<1x1x32xf32> to vector<1x1x32xf32>
    %3 = vector.broadcast %2 : vector<1x1x32xf32> to vector<8x1x32xf32>
    %c0_5 = arith.constant 0 : index
    %c0_6 = arith.constant 0 : index
    %4 = memref.load %arg3[%c0_5, %c0_6] : memref<1x1xf32, #tpu.memory_space<smem>>
    "tpu.trace_start"() <{level = 10 : i32, message = "gkf,gnf->gkn"}> : () -> ()
    %cst = arith.constant dense<0.000000e+00> : vector<8x1x16xf32>
    %5 = tpu.matmul %3, %0, %cst {dimension_numbers = #tpu.dot_dimension_numbers<[2], [2], [1], [1], [0, 0, 0, 1, 1, 1], [0], [0]>} : vector<8x1x32xf32>, vector<8x16x32xf32>, vector<8x1x16xf32> -> vector<8x1x16xf32>
    "tpu.trace_stop"() : () -> ()
    %6 = vector.broadcast %4 : f32 to vector<8x1x16xf32>
    %7 = arith.addf %5, %6 : vector<8x1x16xf32>
    %cst_7 = arith.constant 0.000000e+00 : f32
    %8 = vector.broadcast %cst_7 : f32 to vector<8x1x16xf32>
    %9 = arith.cmpf ogt, %7, %8 : vector<8x1x16xf32>
    %cst_8 = arith.constant 0.00999999977 : f32
    %10 = vector.broadcast %cst_8 : f32 to vector<8x1x16xf32>
    %11 = arith.mulf %10, %7 : vector<8x1x16xf32>
    %12 = arith.select %9, %7, %11 : vector<8x1x16xi1>, vector<8x1x16xf32>
    %13 = math.exp %12 : vector<8x1x16xf32>
    "tpu.trace_start"() <{level = 10 : i32, message = "gkn,gnf->gkf"}> : () -> ()
    %cst_9 = arith.constant dense<0.000000e+00> : vector<8x1x32xf32>
    %14 = tpu.matmul %13, %0, %cst_9 {dimension_numbers = #tpu.dot_dimension_numbers<[2], [1], [1], [2], [0, 0, 0, 1, 1, 2], [0], [0]>} : vector<8x1x16xf32>, vector<8x16x32xf32>, vector<8x1x32xf32> -> vector<8x1x32xf32>
    "tpu.trace_stop"() : () -> ()
    %cst_10 = arith.constant 1.000000e-01 : f32
    %15 = vector.broadcast %cst_10 : f32 to vector<8x1x32xf32>
    %16 = arith.mulf %14, %15 : vector<8x1x32xf32>
    %c0_11 = arith.constant 0 : index
    %c0_12 = arith.constant 0 : index
    %c0_13 = arith.constant 0 : index
    %17 = vector.load %arg4[%c0_11, %c0_12, %c0_13] : memref<8x1x32xf32, #tpu.memory_space<vmem>>, vector<8x1x32xf32>
    tpu.vector_store %arg4[%c0_11, %c0_12, %c0_13], %16 {strides = array<i32>} : memref<8x1x32xf32, #tpu.memory_space<vmem>>, vector<8x1x32xf32>,
    return
  }
  func.func @transform_0(%arg0: i32) -> (i32, i32, i32) {
    %c0_i32 = arith.constant 0 : i32
    %c0_i32_0 = arith.constant 0 : i32
    %c0_i32_1 = arith.constant 0 : i32
    return %arg0, %c0_i32, %c0_i32_0 : i32, i32, i32
  }
  func.func @transform_1(%arg0: i32) -> (i32, i32, i32) {
    %c0_i32 = arith.constant 0 : i32
    %c0_i32_0 = arith.constant 0 : i32
    %c0_i32_1 = arith.constant 0 : i32
    %c0_i32_2 = arith.constant 0 : i32
    return %c0_i32, %c0_i32_0, %c0_i32_1 : i32, i32, i32
  }
  func.func @transform_2(%arg0: i32) -> (i32, i32) {
    %c0_i32 = arith.constant 0 : i32
    %c0_i32_0 = arith.constant 0 : i32
    %c0_i32_1 = arith.constant 0 : i32
    return %c0_i32, %c0_i32_0 : i32, i32
  }
  func.func @transform_3(%arg0: i32) -> (i32, i32, i32) {
    %c0_i32 = arith.constant 0 : i32
    %c0_i32_0 = arith.constant 0 : i32
    %c0_i32_1 = arith.constant 0 : i32
    return %arg0, %c0_i32, %c0_i32_0 : i32, i32, i32
  }
}

</mosaic_0001>

<llo_original>
// kernel: tpu_custom_call.1
$region0: #{tpu_custom_call.1}
  #allocation0 [shape = 'u32[]', space=smem, size = 0x4, offset = 0x4, fixed_abs, tag = 'smem constant byte address 0x4 - core index']
  #allocation1 [shape = 'u32[144,128]{1,0:T(1,128)}', space=vmem, size = 0x12000, scoped, tag = 'internal scratch']
  #allocation2 [shape = 'f32[1,1]{1,0:T(1,128)S(6)}', space=smem, size = 0x200, scoped, tag = 'scoped memory for tpu_custom_call.1']
  %s0 = inlined_call_operand.hbm [shape: f32[8,16,32], index: 0, kind: input, shape index: {}]
  %s1 = inlined_call_operand.vmem [shape: f32[1,1,32], index: 1, kind: input, shape index: {}]
  %s2 = inlined_call_operand.<no memory space> [shape: f32[1,1], index: 2, kind: input, shape index: {}]
  %s3 = inlined_call_operand.hbm [shape: f32[8,1,32], index: 3, kind: output, shape index: {}]
  %s4 = sld [smem:[#allocation0]]
  $region26: #{tpu_custom_call.1} parent=0
    _
  %s6 = ssub.s32 1, %s4
  %s7 = scalar_select 0, %s6, %s4
  %8 = sst [smem:[#allocation2]] %s2
  $region1: #{tpu_custom_call.1} parent=0
    #allocation3 [shape = 'u8[65536]{0}', space=vmem, size = 0x10000, scoped, tag = 'input window, operand 0, single buffered']
    #allocation4 [shape = 's32[1]{0}', space=sflag, size = 0x4, scoped, tag = 'scoped memory for tpu_custom_call.1']
    #allocation5 [shape = 's32[1]{0}', space=sflag, size = 0x4, scoped, tag = 'scoped memory for tpu_custom_call.1']
    #allocation6 [shape = 'u8[4096]{0}', space=vmem, size = 0x1000, scoped, tag = 'output window, operand 0, single buffered']
    %9 = vsyncpa [#allocation4], 0
    %10 = vsyncpa [#allocation5], 0
    // Predicated region
    $region2: #{tpu_custom_call.1} parent=1 // pred_check
      _
    $region3: #{tpu_custom_call.1} parent=1 // pred_check_branch
      %12 = sbr.rel (0) target = $region5
    $region4: #{tpu_custom_call.1} parent=1 // pred_region
      %s14 = ssub.s32 2048, 2048
      %15 = vsyncadd [#allocation4], %s14
      %s16 = sshll.u32 [#allocation3], 4
      %s17 = int_to_ptr.vmem [resolvable:$true] %s16
      %22 = dma.hbm_to_vmem [thread:$0]  %s0, 2048, %s17, [#allocation4], 128, 128, 8
    $region5: #{tpu_custom_call.1} parent=1 // pred_fallthru
      _
    // Predicated region
    $region6: #{tpu_custom_call.1} parent=1 // pred_check
      _
    $region7: #{tpu_custom_call.1} parent=1 // pred_check_branch
      %24 = sbr.rel (0) target = $region9
    $region8: #{tpu_custom_call.1} parent=1 // pred_region
      _
    $region9: #{tpu_custom_call.1} parent=1 // pred_fallthru
      _
    // Predicated region
    $region10: #{tpu_custom_call.1} parent=1 // pred_check
      _
    $region11: #{tpu_custom_call.1} parent=1 // pred_check_branch
      %26 = sbr.rel (0) target = $region13
    $region12: #{tpu_custom_call.1} parent=1 // pred_region
      _
    $region13: #{tpu_custom_call.1} parent=1 // pred_fallthru
      _
    // Predicated region
    $region14: #{tpu_custom_call.1} parent=1 // pred_check
      _
    $region15: #{tpu_custom_call.1} parent=1 // pred_check_branch
      %28 = sbr.rel (0) target = $region17
    $region16: #{tpu_custom_call.1} parent=1 // pred_region
      %29 = dma.done [#allocation4], 2048
    $region17: #{tpu_custom_call.1} parent=1 // pred_fallthru
      _
    %v30 = vld [vmem:[#allocation3] sm:$0xff]
    %v31 = vld [vmem:[#allocation3 + $0x8] sm:$0xff]
    %v32 = vld [vmem:[#allocation3 + $0x10] sm:$0xff]
    %v33 = vld [vmem:[#allocation3 + $0x18] sm:$0xff]
    %v34 = vld [vmem:[#allocation3 + $0x20] sm:$0xff]
    %v35 = vld [vmem:[#allocation3 + $0x28] sm:$0xff]
    %v36 = vld [vmem:[#allocation3 + $0x30] sm:$0xff]
    %v37 = vld [vmem:[#allocation3 + $0x38] sm:$0xff]
    %v38 = vld [vmem:[#allocation3 + $0x40] sm:$0xff]
    %v39 = vld [vmem:[#allocation3 + $0x48] sm:$0xff]
    %v40 = vld [vmem:[#allocation3 + $0x50] sm:$0xff]
    %v41 = vld [vmem:[#allocation3 + $0x58] sm:$0xff]
    %v42 = vld [vmem:[#allocation3 + $0x60] sm:$0xff]
    %v43 = vld [vmem:[#allocation3 + $0x68] sm:$0xff]
    %v44 = vld [vmem:[#allocation3 + $0x70] sm:$0xff]
    %v45 = vld [vmem:[#allocation3 + $0x78] sm:$0xff]
    %v46 = vld [vmem:[%s1] sm:$0x1]
    %s47 = sld [smem:[#allocation2]]
    %v48 = vstv %s47
    %vm49 = vcmask 261120
    %v51 = vsel %vm49, %v46, 0
    %v54 = vsel %vm49, %v30, 0
    %v57 = vsel %vm49, %v31, 0
    %59 = vmatprep.subr.mxu0 0.0
    %60 = vmatpush1.xpose.msra.mxu0 %v54
    %61 = vmatprep.subr.mxu0 0.0
    %62 = vmatpush1.xpose.msra.mxu0 %v57
    %63 = vmatprep.subr.mxu0 0.0
    %64 = vmatpush1.xpose.msra.mxu0 0.0
    %65 = vmatprep.subr.mxu0 0.0
    %66 = vmatpush1.xpose.msra.mxu0 0.0
    %67 = vmatprep.subr.mxu0 0.0
    %68 = vmatpush1.xpose.msra.mxu0 0.0
    %69 = vmatprep.subr.mxu0 0.0
    %70 = vmatpush1.xpose.msra.mxu0 0.0
    %71 = vmatprep.subr.mxu0 0.0
    %72 = vmatpush1.xpose.msra.mxu0 0.0
    %73 = vmatprep.subr.mxu0 0.0
    %74 = vmatpush1.xpose.msra.mxu0 0.0
    %75 = vmatprep.subr.mxu0 0.0
    %76 = vmatpush1.xpose.msra.mxu0 0.0
    %77 = vmatprep.subr.mxu0 0.0
    %78 = vmatpush1.xpose.msra.mxu0 0.0
    %79 = vmatprep.subr.mxu0 0.0
    %80 = vmatpush1.xpose.msra.mxu0 0.0
    %81 = vmatprep.subr.mxu0 0.0
    %82 = vmatpush1.xpose.msra.mxu0 0.0
    %83 = vmatprep.subr.mxu0 0.0
    %84 = vmatpush1.xpose.msra.mxu0 0.0
    %85 = vmatprep.subr.mxu0 0.0
    %86 = vmatpush1.xpose.msra.mxu0 0.0
    %87 = vmatprep.subr.mxu0 0.0
    %88 = vmatpush1.xpose.msra.mxu0 0.0
    %89 = vmatprep.subr.mxu0 0.0
    %90 = vmatpush1.xpose.msra.mxu0 0.0
    %91 = vmatprep.subr.mxu0 0.0
    %92 = vmatpush1.xpose.msra.mxu0 0.0
    %93 = vmatprep.subr.mxu0 0.0
    %94 = vmatpush1.xpose.msra.mxu0 0.0
    %95 = vmatprep.subr.mxu0 0.0
    %96 = vmatpush1.xpose.msra.mxu0 0.0
    %97 = vmatprep.subr.mxu0 0.0
    %98 = vmatpush1.xpose.msra.mxu0 0.0
    %99 = vmatprep.subr.mxu0 0.0
    %100 = vmatpush1.xpose.msra.mxu0 0.0
    %101 = vmatprep.subr.mxu0 0.0
    %102 = vmatpush1.xpose.msra.mxu0 0.0
    %103 = vmatprep.subr.mxu0 0.0
    %104 = vmatpush1.xpose.msra.mxu0 0.0
    %105 = vmatprep.subr.mxu0 0.0
    %106 = vmatpush1.xpose.msra.mxu0 0.0
    %107 = vmatprep.subr.mxu0 0.0
    %108 = vmatpush1.xpose.msra.mxu0 0.0
    %109 = vmatprep.subr.mxu0 0.0
    %110 = vmatpush1.xpose.msra.mxu0 0.0
    %111 = vmatprep.subr.mxu0 0.0
    %112 = vmatpush1.xpose.msra.mxu0 0.0
    %113 = vmatprep.subr.mxu0 0.0
    %114 = vmatpush1.xpose.msra.mxu0 0.0
    %115 = vmatprep.subr.mxu0 0.0
    %116 = vmatpush1.xpose.msra.mxu0 0.0
    %117 = vmatprep.subr.mxu0 0.0
    %118 = vmatpush1.xpose.msra.mxu0 0.0
    %119 = vmatprep.subr.mxu0 0.0
    %120 = vmatpush1.xpose.msra.mxu0 0.0
    %121 = vmatprep.subr.mxu0 0.0
    %122 = vmatpush1.xpose.msra.mxu0 0.0
    %123 = vmatprep.mubr.f32.mxu0 0.0
    %124 = vmatmul.mubr.f32.gmra.mrb[0].mxu0 %v51
    %v125 = vpop.f32.mrb[0].mxu0
    %v126 = vadd.f32 %v48, %v125
    %v127 = vpop.f32.mrb[0].mxu0
    %128 = vdwg.mxu0
    %v130 = vsel %vm49, %v32, 0
    %v133 = vsel %vm49, %v33, 0
    %135 = vmatprep.subr.mxu0 0.0
    %136 = vmatpush1.xpose.msra.mxu0 %v130
    %137 = vmatprep.subr.mxu0 0.0
    %138 = vmatpush1.xpose.msra.mxu0 %v133
    %139 = vmatprep.subr.mxu0 0.0
    %140 = vmatpush1.xpose.msra.mxu0 0.0
    %141 = vmatprep.subr.mxu0 0.0
    %142 = vmatpush1.xpose.msra.mxu0 0.0
    %143 = vmatprep.subr.mxu0 0.0
    %144 = vmatpush1.xpose.msra.mxu0 0.0
    %145 = vmatprep.subr.mxu0 0.0
    %146 = vmatpush1.xpose.msra.mxu0 0.0
    %147 = vmatprep.subr.mxu0 0.0
    %148 = vmatpush1.xpose.msra.mxu0 0.0
    %149 = vmatprep.subr.mxu0 0.0
    %150 = vmatpush1.xpose.msra.mxu0 0.0
    %151 = vmatprep.subr.mxu0 0.0
    %152 = vmatpush1.xpose.msra.mxu0 0.0
    %153 = vmatprep.subr.mxu0 0.0
    %154 = vmatpush1.xpose.msra.mxu0 0.0
    %155 = vmatprep.subr.mxu0 0.0
    %156 = vmatpush1.xpose.msra.mxu0 0.0
    %157 = vmatprep.subr.mxu0 0.0
    %158 = vmatpush1.xpose.msra.mxu0 0.0
    %159 = vmatprep.subr.mxu0 0.0
    %160 = vmatpush1.xpose.msra.mxu0 0.0
    %161 = vmatprep.subr.mxu0 0.0
    %162 = vmatpush1.xpose.msra.mxu0 0.0
    %163 = vmatprep.subr.mxu0 0.0
    %164 = vmatpush1.xpose.msra.mxu0 0.0
    %165 = vmatprep.subr.mxu0 0.0
    %166 = vmatpush1.xpose.msra.mxu0 0.0
    %167 = vmatprep.subr.mxu0 0.0
    %168 = vmatpush1.xpose.msra.mxu0 0.0
    %169 = vmatprep.subr.mxu0 0.0
    %170 = vmatpush1.xpose.msra.mxu0 0.0
    %171 = vmatprep.subr.mxu0 0.0
    %172 = vmatpush1.xpose.msra.mxu0 0.0
    %173 = vmatprep.subr.mxu0 0.0
    %174 = vmatpush1.xpose.msra.mxu0 0.0
    %175 = vmatprep.subr.mxu0 0.0
    %176 = vmatpush1.xpose.msra.mxu0 0.0
    %177 = vmatprep.subr.mxu0 0.0
    %178 = vmatpush1.xpose.msra.mxu0 0.0
    %179 = vmatprep.subr.mxu0 0.0
    %180 = vmatpush1.xpose.msra.mxu0 0.0
    %181 = vmatprep.subr.mxu0 0.0
    %182 = vmatpush1.xpose.msra.mxu0 0.0
    %183 = vmatprep.subr.mxu0 0.0
    %184 = vmatpush1.xpose.msra.mxu0 0.0
    %185 = vmatprep.subr.mxu0 0.0
    %186 = vmatpush1.xpose.msra.mxu0 0.0
    %187 = vmatprep.subr.mxu0 0.0
    %188 = vmatpush1.xpose.msra.mxu0 0.0
    %189 = vmatprep.subr.mxu0 0.0
    %190 = vmatpush1.xpose.msra.mxu0 0.0
    %191 = vmatprep.subr.mxu0 0.0
    %192 = vmatpush1.xpose.msra.mxu0 0.0
    %193 = vmatprep.subr.mxu0 0.0
    %194 = vmatpush1.xpose.msra.mxu0 0.0
    %195 = vmatprep.subr.mxu0 0.0
    %196 = vmatpush1.xpose.msra.mxu0 0.0
    %197 = vmatprep.subr.mxu0 0.0
    %198 = vmatpush1.xpose.msra.mxu0 0.0
    %199 = vmatprep.mubr.f32.mxu0 0.0
    %200 = vmatmul.mubr.f32.gmra.mrb[0].mxu0 %v51
    %v201 = vpop.f32.mrb[0].mxu0
    %v202 = vadd.f32 %v48, %v201
    %v203 = vpop.f32.mrb[0].mxu0
    %204 = vdwg.mxu0
    %v206 = vsel %vm49, %v34, 0
    %v209 = vsel %vm49, %v35, 0
    %211 = vmatprep.subr.mxu0 0.0
    %212 = vmatpush1.xpose.msra.mxu0 %v206
    %213 = vmatprep.subr.mxu0 0.0
    %214 = vmatpush1.xpose.msra.mxu0 %v209
    %215 = vmatprep.subr.mxu0 0.0
    %216 = vmatpush1.xpose.msra.mxu0 0.0
    %217 = vmatprep.subr.mxu0 0.0
    %218 = vmatpush1.xpose.msra.mxu0 0.0
    %219 = vmatprep.subr.mxu0 0.0
    %220 = vmatpush1.xpose.msra.mxu0 0.0
    %221 = vmatprep.subr.mxu0 0.0
    %222 = vmatpush1.xpose.msra.mxu0 0.0
    %223 = vmatprep.subr.mxu0 0.0
    %224 = vmatpush1.xpose.msra.mxu0 0.0
    %225 = vmatprep.subr.mxu0 0.0
    %226 = vmatpush1.xpose.msra.mxu0 0.0
    %227 = vmatprep.subr.mxu0 0.0
    %228 = vmatpush1.xpose.msra.mxu0 0.0
    %229 = vmatprep.subr.mxu0 0.0
    %230 = vmatpush1.xpose.msra.mxu0 0.0
    %231 = vmatprep.subr.mxu0 0.0
    %232 = vmatpush1.xpose.msra.mxu0 0.0
    %233 = vmatprep.subr.mxu0 0.0
    %234 = vmatpush1.xpose.msra.mxu0 0.0
    %235 = vmatprep.subr.mxu0 0.0
    %236 = vmatpush1.xpose.msra.mxu0 0.0
    %237 = vmatprep.subr.mxu0 0.0
    %238 = vmatpush1.xpose.msra.mxu0 0.0
    %239 = vmatprep.subr.mxu0 0.0
    %240 = vmatpush1.xpose.msra.mxu0 0.0
    %241 = vmatprep.subr.mxu0 0.0
    %242 = vmatpush1.xpose.msra.mxu0 0.0
    %243 = vmatprep.subr.mxu0 0.0
    %244 = vmatpush1.xpose.msra.mxu0 0.0
    %245 = vmatprep.subr.mxu0 0.0
    %246 = vmatpush1.xpose.msra.mxu0 0.0
    %247 = vmatprep.subr.mxu0 0.0
    %248 = vmatpush1.xpose.msra.mxu0 0.0
    %249 = vmatprep.subr.mxu0 0.0
    %250 = vmatpush1.xpose.msra.mxu0 0.0
    %251 = vmatprep.subr.mxu0 0.0
    %252 = vmatpush1.xpose.msra.mxu0 0.0
    %253 = vmatprep.subr.mxu0 0.0
    %254 = vmatpush1.xpose.msra.mxu0 0.0
    %255 = vmatprep.subr.mxu0 0.0
    %256 = vmatpush1.xpose.msra.mxu0 0.0
    %257 = vmatprep.subr.mxu0 0.0
    %258 = vmatpush1.xpose.msra.mxu0 0.0
    %259 = vmatprep.subr.mxu0 0.0
    %260 = vmatpush1.xpose.msra.mxu0 0.0
    %261 = vmatprep.subr.mxu0 0.0
    %262 = vmatpush1.xpose.msra.mxu0 0.0
    %263 = vmatprep.subr.mxu0 0.0
    %264 = vmatpush1.xpose.msra.mxu0 0.0
    %265 = vmatprep.subr.mxu0 0.0
    %266 = vmatpush1.xpose.msra.mxu0 0.0
    %267 = vmatprep.subr.mxu0 0.0
    %268 = vmatpush1.xpose.msra.mxu0 0.0
    %269 = vmatprep.subr.mxu0 0.0
    %270 = vmatpush1.xpose.msra.mxu0 0.0
    %271 = vmatprep.subr.mxu0 0.0
    %272 = vmatpush1.xpose.msra.mxu0 0.0
    %273 = vmatprep.subr.mxu0 0.0
    %274 = vmatpush1.xpose.msra.mxu0 0.0
    %275 = vmatprep.mubr.f32.mxu0 0.0
    %276 = vmatmul.mubr.f32.gmra.mrb[0].mxu0 %v51
    %v277 = vpop.f32.mrb[0].mxu0
    %v278 = vadd.f32 %v48, %v277
    %v279 = vpop.f32.mrb[0].mxu0
    %280 = vdwg.mxu0
    %v282 = vsel %vm49, %v36, 0
    %v285 = vsel %vm49, %v37, 0
    %287 = vmatprep.subr.mxu0 0.0
    %288 = vmatpush1.xpose.msra.mxu0 %v282
    %289 = vmatprep.subr.mxu0 0.0
    %290 = vmatpush1.xpose.msra.mxu0 %v285
    %291 = vmatprep.subr.mxu0 0.0
    %292 = vmatpush1.xpose.msra.mxu0 0.0
    %293 = vmatprep.subr.mxu0 0.0
    %294 = vmatpush1.xpose.msra.mxu0 0.0
    %295 = vmatprep.subr.mxu0 0.0
    %296 = vmatpush1.xpose.msra.mxu0 0.0
    %297 = vmatprep.subr.mxu0 0.0
    %298 = vmatpush1.xpose.msra.mxu0 0.0
    %299 = vmatprep.subr.mxu0 0.0
    %300 = vmatpush1.xpose.msra.mxu0 0.0
    %301 = vmatprep.subr.mxu0 0.0
    %302 = vmatpush1.xpose.msra.mxu0 0.0
    %303 = vmatprep.subr.mxu0 0.0
    %304 = vmatpush1.xpose.msra.mxu0 0.0
    %305 = vmatprep.subr.mxu0 0.0
    %306 = vmatpush1.xpose.msra.mxu0 0.0
    %307 = vmatprep.subr.mxu0 0.0
    %308 = vmatpush1.xpose.msra.mxu0 0.0
    %309 = vmatprep.subr.mxu0 0.0
    %310 = vmatpush1.xpose.msra.mxu0 0.0
    %311 = vmatprep.subr.mxu0 0.0
    %312 = vmatpush1.xpose.msra.mxu0 0.0
    %313 = vmatprep.subr.mxu0 0.0
    %314 = vmatpush1.xpose.msra.mxu0 0.0
    %315 = vmatprep.subr.mxu0 0.0
    %316 = vmatpush1.xpose.msra.mxu0 0.0
    %317 = vmatprep.subr.mxu0 0.0
    %318 = vmatpush1.xpose.msra.mxu0 0.0
    %319 = vmatprep.subr.mxu0 0.0
    %320 = vmatpush1.xpose.msra.mxu0 0.0
    %321 = vmatprep.subr.mxu0 0.0
    %322 = vmatpush1.xpose.msra.mxu0 0.0
    %323 = vmatprep.subr.mxu0 0.0
    %324 = vmatpush1.xpose.msra.mxu0 0.0
    %325 = vmatprep.subr.mxu0 0.0
    %326 = vmatpush1.xpose.msra.mxu0 0.0
    %327 = vmatprep.subr.mxu0 0.0
    %328 = vmatpush1.xpose.msra.mxu0 0.0
    %329 = vmatprep.subr.mxu0 0.0
    %330 = vmatpush1.xpose.msra.mxu0 0.0
    %331 = vmatprep.subr.mxu0 0.0
    %332 = vmatpush1.xpose.msra.mxu0 0.0
    %333 = vmatprep.subr.mxu0 0.0
    %334 = vmatpush1.xpose.msra.mxu0 0.0
    %335 = vmatprep.subr.mxu0 0.0
    %336 = vmatpush1.xpose.msra.mxu0 0.0
    %337 = vmatprep.subr.mxu0 0.0
    %338 = vmatpush1.xpose.msra.mxu0 0.0
    %339 = vmatprep.subr.mxu0 0.0
    %340 = vmatpush1.xpose.msra.mxu0 0.0
    %341 = vmatprep.subr.mxu0 0.0
    %342 = vmatpush1.xpose.msra.mxu0 0.0
    %343 = vmatprep.subr.mxu0 0.0
    %344 = vmatpush1.xpose.msra.mxu0 0.0
    %345 = vmatprep.subr.mxu0 0.0
    %346 = vmatpush1.xpose.msra.mxu0 0.0
    %347 = vmatprep.subr.mxu0 0.0
    %348 = vmatpush1.xpose.msra.mxu0 0.0
    %349 = vmatprep.subr.mxu0 0.0
    %350 = vmatpush1.xpose.msra.mxu0 0.0
    %351 = vmatprep.mubr.f32.mxu0 0.0
    %352 = vmatmul.mubr.f32.gmra.mrb[0].mxu0 %v51
    %v353 = vpop.f32.mrb[0].mxu0
    %v354 = vadd.f32 %v48, %v353
    %v355 = vpop.f32.mrb[0].mxu0
    %356 = vdwg.mxu0
    %v358 = vsel %vm49, %v38, 0
    %v361 = vsel %vm49, %v39, 0
    %363 = vmatprep.subr.mxu0 0.0
    %364 = vmatpush1.xpose.msra.mxu0 %v358
    %365 = vmatprep.subr.mxu0 0.0
    %366 = vmatpush1.xpose.msra.mxu0 %v361
    %367 = vmatprep.subr.mxu0 0.0
    %368 = vmatpush1.xpose.msra.mxu0 0.0
    %369 = vmatprep.subr.mxu0 0.0
    %370 = vmatpush1.xpose.msra.mxu0 0.0
    %371 = vmatprep.subr.mxu0 0.0
    %372 = vmatpush1.xpose.msra.mxu0 0.0
    %373 = vmatprep.subr.mxu0 0.0
    %374 = vmatpush1.xpose.msra.mxu0 0.0
    %375 = vmatprep.subr.mxu0 0.0
    %376 = vmatpush1.xpose.msra.mxu0 0.0
    %377 = vmatprep.subr.mxu0 0.0
    %378 = vmatpush1.xpose.msra.mxu0 0.0
    %379 = vmatprep.subr.mxu0 0.0
    %380 = vmatpush1.xpose.msra.mxu0 0.0
    %381 = vmatprep.subr.mxu0 0.0
    %382 = vmatpush1.xpose.msra.mxu0 0.0
    %383 = vmatprep.subr.mxu0 0.0
    %384 = vmatpush1.xpose.msra.mxu0 0.0
    %385 = vmatprep.subr.mxu0 0.0
    %386 = vmatpush1.xpose.msra.mxu0 0.0
    %387 = vmatprep.subr.mxu0 0.0
    %388 = vmatpush1.xpose.msra.mxu0 0.0
    %389 = vmatprep.subr.mxu0 0.0
    %390 = vmatpush1.xpose.msra.mxu0 0.0
    %391 = vmatprep.subr.mxu0 0.0
    %392 = vmatpush1.xpose.msra.mxu0 0.0
    %393 = vmatprep.subr.mxu0 0.0
    %394 = vmatpush1.xpose.msra.mxu0 0.0
    %395 = vmatprep.subr.mxu0 0.0
    %396 = vmatpush1.xpose.msra.mxu0 0.0
    %397 = vmatprep.subr.mxu0 0.0
    %398 = vmatpush1.xpose.msra.mxu0 0.0
    %399 = vmatprep.subr.mxu0 0.0
    %400 = vmatpush1.xpose.msra.mxu0 0.0
    %401 = vmatprep.subr.mxu0 0.0
    %402 = vmatpush1.xpose.msra.mxu0 0.0
    %403 = vmatprep.subr.mxu0 0.0
    %404 = vmatpush1.xpose.msra.mxu0 0.0
    %405 = vmatprep.subr.mxu0 0.0
    %406 = vmatpush1.xpose.msra.mxu0 0.0
    %407 = vmatprep.subr.mxu0 0.0
    %408 = vmatpush1.xpose.msra.mxu0 0.0
    %409 = vmatprep.subr.mxu0 0.0
    %410 = vmatpush1.xpose.msra.mxu0 0.0
    %411 = vmatprep.subr.mxu0 0.0
    %412 = vmatpush1.xpose.msra.mxu0 0.0
    %413 = vmatprep.subr.mxu0 0.0
    %414 = vmatpush1.xpose.msra.mxu0 0.0
    %415 = vmatprep.subr.mxu0 0.0
    %416 = vmatpush1.xpose.msra.mxu0 0.0
    %417 = vmatprep.subr.mxu0 0.0
    %418 = vmatpush1.xpose.msra.mxu0 0.0
    %419 = vmatprep.subr.mxu0 0.0
    %420 = vmatpush1.xpose.msra.mxu0 0.0
    %421 = vmatprep.subr.mxu0 0.0
    %422 = vmatpush1.xpose.msra.mxu0 0.0
    %423 = vmatprep.subr.mxu0 0.0
    %424 = vmatpush1.xpose.msra.mxu0 0.0
    %425 = vmatprep.subr.mxu0 0.0
    %426 = vmatpush1.xpose.msra.mxu0 0.0
    %427 = vmatprep.mubr.f32.mxu0 0.0
    %428 = vmatmul.mubr.f32.gmra.mrb[0].mxu0 %v51
    %v429 = vpop.f32.mrb[0].mxu0
    %v430 = vadd.f32 %v48, %v429
    %v431 = vpop.f32.mrb[0].mxu0
    %432 = vdwg.mxu0
    %v434 = vsel %vm49, %v40, 0
    %v437 = vsel %vm49, %v41, 0
    %439 = vmatprep.subr.mxu0 0.0
    %440 = vmatpush1.xpose.msra.mxu0 %v434
    %441 = vmatprep.subr.mxu0 0.0
    %442 = vmatpush1.xpose.msra.mxu0 %v437
    %443 = vmatprep.subr.mxu0 0.0
    %444 = vmatpush1.xpose.msra.mxu0 0.0
    %445 = vmatprep.subr.mxu0 0.0
    %446 = vmatpush1.xpose.msra.mxu0 0.0
    %447 = vmatprep.subr.mxu0 0.0
    %448 = vmatpush1.xpose.msra.mxu0 0.0
    %449 = vmatprep.subr.mxu0 0.0
    %450 = vmatpush1.xpose.msra.mxu0 0.0
    %451 = vmatprep.subr.mxu0 0.0
    %452 = vmatpush1.xpose.msra.mxu0 0.0
    %453 = vmatprep.subr.mxu0 0.0
    %454 = vmatpush1.xpose.msra.mxu0 0.0
    %455 = vmatprep.subr.mxu0 0.0
    %456 = vmatpush1.xpose.msra.mxu0 0.0
    %457 = vmatprep.subr.mxu0 0.0
    %458 = vmatpush1.xpose.msra.mxu0 0.0
    %459 = vmatprep.subr.mxu0 0.0
    %460 = vmatpush1.xpose.msra.mxu0 0.0
    %461 = vmatprep.subr.mxu0 0.0
    %462 = vmatpush1.xpose.msra.mxu0 0.0
    %463 = vmatprep.subr.mxu0 0.0
    %464 = vmatpush1.xpose.msra.mxu0 0.0
    %465 = vmatprep.subr.mxu0 0.0
    %466 = vmatpush1.xpose.msra.mxu0 0.0
    %467 = vmatprep.subr.mxu0 0.0
    %468 = vmatpush1.xpose.msra.mxu0 0.0
    %469 = vmatprep.subr.mxu0 0.0
    %470 = vmatpush1.xpose.msra.mxu0 0.0
    %471 = vmatprep.subr.mxu0 0.0
    %472 = vmatpush1.xpose.msra.mxu0 0.0
    %473 = vmatprep.subr.mxu0 0.0
    %474 = vmatpush1.xpose.msra.mxu0 0.0
    %475 = vmatprep.subr.mxu0 0.0
    %476 = vmatpush1.xpose.msra.mxu0 0.0
    %477 = vmatprep.subr.mxu0 0.0
    %478 = vmatpush1.xpose.msra.mxu0 0.0
    %479 = vmatprep.subr.mxu0 0.0
    %480 = vmatpush1.xpose.msra.mxu0 0.0
    %481 = vmatprep.subr.mxu0 0.0
    %482 = vmatpush1.xpose.msra.mxu0 0.0
    %483 = vmatprep.subr.mxu0 0.0
    %484 = vmatpush1.xpose.msra.mxu0 0.0
    %485 = vmatprep.subr.mxu0 0.0
    %486 = vmatpush1.xpose.msra.mxu0 0.0
    %487 = vmatprep.subr.mxu0 0.0
    %488 = vmatpush1.xpose.msra.mxu0 0.0
    %489 = vmatprep.subr.mxu0 0.0
    %490 = vmatpush1.xpose.msra.mxu0 0.0
    %491 = vmatprep.subr.mxu0 0.0
    %492 = vmatpush1.xpose.msra.mxu0 0.0
    %493 = vmatprep.subr.mxu0 0.0
    %494 = vmatpush1.xpose.msra.mxu0 0.0
    %495 = vmatprep.subr.mxu0 0.0
    %496 = vmatpush1.xpose.msra.mxu0 0.0
    %497 = vmatprep.subr.mxu0 0.0
    %498 = vmatpush1.xpose.msra.mxu0 0.0
    %499 = vmatprep.subr.mxu0 0.0
    %500 = vmatpush1.xpose.msra.mxu0 0.0
    %501 = vmatprep.subr.mxu0 0.0
    %502 = vmatpush1.xpose.msra.mxu0 0.0
    %503 = vmatprep.mubr.f32.mxu0 0.0
    %504 = vmatmul.mubr.f32.gmra.mrb[0].mxu0 %v51
    %v505 = vpop.f32.mrb[0].mxu0
    %v506 = vadd.f32 %v48, %v505
    %v507 = vpop.f32.mrb[0].mxu0
    %508 = vdwg.mxu0
    %v510 = vsel %vm49, %v42, 0
    %v513 = vsel %vm49, %v43, 0
    %515 = vmatprep.subr.mxu0 0.0
    %516 = vmatpush1.xpose.msra.mxu0 %v510
    %517 = vmatprep.subr.mxu0 0.0
    %518 = vmatpush1.xpose.msra.mxu0 %v513
    %519 = vmatprep.subr.mxu0 0.0
    %520 = vmatpush1.xpose.msra.mxu0 0.0
    %521 = vmatprep.subr.mxu0 0.0
    %522 = vmatpush1.xpose.msra.mxu0 0.0
    %523 = vmatprep.subr.mxu0 0.0
    %524 = vmatpush1.xpose.msra.mxu0 0.0
    %525 = vmatprep.subr.mxu0 0.0
    %526 = vmatpush1.xpose.msra.mxu0 0.0
    %527 = vmatprep.subr.mxu0 0.0
    %528 = vmatpush1.xpose.msra.mxu0 0.0
    %529 = vmatprep.subr.mxu0 0.0
    %530 = vmatpush1.xpose.msra.mxu0 0.0
    %531 = vmatprep.subr.mxu0 0.0
    %532 = vmatpush1.xpose.msra.mxu0 0.0
    %533 = vmatprep.subr.mxu0 0.0
    %534 = vmatpush1.xpose.msra.mxu0 0.0
    %535 = vmatprep.subr.mxu0 0.0
    %536 = vmatpush1.xpose.msra.mxu0 0.0
    %537 = vmatprep.subr.mxu0 0.0
    %538 = vmatpush1.xpose.msra.mxu0 0.0
    %539 = vmatprep.subr.mxu0 0.0
    %540 = vmatpush1.xpose.msra.mxu0 0.0
    %541 = vmatprep.subr.mxu0 0.0
    %542 = vmatpush1.xpose.msra.mxu0 0.0
    %543 = vmatprep.subr.mxu0 0.0
    %544 = vmatpush1.xpose.msra.mxu0 0.0
    %545 = vmatprep.subr.mxu0 0.0
    %546 = vmatpush1.xpose.msra.mxu0 0.0
    %547 = vmatprep.subr.mxu0 0.0
    %548 = vmatpush1.xpose.msra.mxu0 0.0
    %549 = vmatprep.subr.mxu0 0.0
    %550 = vmatpush1.xpose.msra.mxu0 0.0
    %551 = vmatprep.subr.mxu0 0.0
    %552 = vmatpush1.xpose.msra.mxu0 0.0
    %553 = vmatprep.subr.mxu0 0.0
    %554 = vmatpush1.xpose.msra.mxu0 0.0
    %555 = vmatprep.subr.mxu0 0.0
    %556 = vmatpush1.xpose.msra.mxu0 0.0
    %557 = vmatprep.subr.mxu0 0.0
    %558 = vmatpush1.xpose.msra.mxu0 0.0
    %559 = vmatprep.subr.mxu0 0.0
    %560 = vmatpush1.xpose.msra.mxu0 0.0
    %561 = vmatprep.subr.mxu0 0.0
    %562 = vmatpush1.xpose.msra.mxu0 0.0
    %563 = vmatprep.subr.mxu0 0.0
    %564 = vmatpush1.xpose.msra.mxu0 0.0
    %565 = vmatprep.subr.mxu0 0.0
    %566 = vmatpush1.xpose.msra.mxu0 0.0
    %567 = vmatprep.subr.mxu0 0.0
    %568 = vmatpush1.xpose.msra.mxu0 0.0
    %569 = vmatprep.subr.mxu0 0.0
    %570 = vmatpush1.xpose.msra.mxu0 0.0
    %571 = vmatprep.subr.mxu0 0.0
    %572 = vmatpush1.xpose.msra.mxu0 0.0
    %573 = vmatprep.subr.mxu0 0.0
    %574 = vmatpush1.xpose.msra.mxu0 0.0
    %575 = vmatprep.subr.mxu0 0.0
    %576 = vmatpush1.xpose.msra.mxu0 0.0
    %577 = vmatprep.subr.mxu0 0.0
    %578 = vmatpush1.xpose.msra.mxu0 0.0
    %579 = vmatprep.mubr.f32.mxu0 0.0
    %580 = vmatmul.mubr.f32.gmra.mrb[0].mxu0 %v51
    %v581 = vpop.f32.mrb[0].mxu0
    %v582 = vadd.f32 %v48, %v581
    %v583 = vpop.f32.mrb[0].mxu0
    %584 = vdwg.mxu0
    %v586 = vsel %vm49, %v44, 0
    %v589 = vsel %vm49, %v45, 0
    %591 = vmatprep.subr.mxu0 0.0
    %592 = vmatpush1.xpose.msra.mxu0 %v586
    %593 = vmatprep.subr.mxu0 0.0
    %594 = vmatpush1.xpose.msra.mxu0 %v589
    %595 = vmatprep.subr.mxu0 0.0
    %596 = vmatpush1.xpose.msra.mxu0 0.0
    %597 = vmatprep.subr.mxu0 0.0
    %598 = vmatpush1.xpose.msra.mxu0 0.0
    %599 = vmatprep.subr.mxu0 0.0
    %600 = vmatpush1.xpose.msra.mxu0 0.0
    %601 = vmatprep.subr.mxu0 0.0
    %602 = vmatpush1.xpose.msra.mxu0 0.0
    %603 = vmatprep.subr.mxu0 0.0
    %604 = vmatpush1.xpose.msra.mxu0 0.0
    %605 = vmatprep.subr.mxu0 0.0
    %606 = vmatpush1.xpose.msra.mxu0 0.0
    %607 = vmatprep.subr.mxu0 0.0
    %608 = vmatpush1.xpose.msra.mxu0 0.0
    %609 = vmatprep.subr.mxu0 0.0
    %610 = vmatpush1.xpose.msra.mxu0 0.0
    %611 = vmatprep.subr.mxu0 0.0
    %612 = vmatpush1.xpose.msra.mxu0 0.0
    %613 = vmatprep.subr.mxu0 0.0
    %614 = vmatpush1.xpose.msra.mxu0 0.0
    %615 = vmatprep.subr.mxu0 0.0
    %616 = vmatpush1.xpose.msra.mxu0 0.0
    %617 = vmatprep.subr.mxu0 0.0
    %618 = vmatpush1.xpose.msra.mxu0 0.0
    %619 = vmatprep.subr.mxu0 0.0
    %620 = vmatpush1.xpose.msra.mxu0 0.0
    %621 = vmatprep.subr.mxu0 0.0
    %622 = vmatpush1.xpose.msra.mxu0 0.0
    %623 = vmatprep.subr.mxu0 0.0
    %624 = vmatpush1.xpose.msra.mxu0 0.0
    %625 = vmatprep.subr.mxu0 0.0
    %626 = vmatpush1.xpose.msra.mxu0 0.0
    %627 = vmatprep.subr.mxu0 0.0
    %628 = vmatpush1.xpose.msra.mxu0 0.0
    %629 = vmatprep.subr.mxu0 0.0
    %630 = vmatpush1.xpose.msra.mxu0 0.0
    %631 = vmatprep.subr.mxu0 0.0
    %632 = vmatpush1.xpose.msra.mxu0 0.0
    %633 = vmatprep.subr.mxu0 0.0
    %634 = vmatpush1.xpose.msra.mxu0 0.0
    %635 = vmatprep.subr.mxu0 0.0
    %636 = vmatpush1.xpose.msra.mxu0 0.0
    %637 = vmatprep.subr.mxu0 0.0
    %638 = vmatpush1.xpose.msra.mxu0 0.0
    %639 = vmatprep.subr.mxu0 0.0
    %640 = vmatpush1.xpose.msra.mxu0 0.0
    %641 = vmatprep.subr.mxu0 0.0
    %642 = vmatpush1.xpose.msra.mxu0 0.0
    %643 = vmatprep.subr.mxu0 0.0
    %644 = vmatpush1.xpose.msra.mxu0 0.0
    %645 = vmatprep.subr.mxu0 0.0
    %646 = vmatpush1.xpose.msra.mxu0 0.0
    %647 = vmatprep.subr.mxu0 0.0
    %648 = vmatpush1.xpose.msra.mxu0 0.0
    %649 = vmatprep.subr.mxu0 0.0
    %650 = vmatpush1.xpose.msra.mxu0 0.0
    %651 = vmatprep.subr.mxu0 0.0
    %652 = vmatpush1.xpose.msra.mxu0 0.0
    %653 = vmatprep.subr.mxu0 0.0
    %654 = vmatpush1.xpose.msra.mxu0 0.0
    %655 = vmatprep.mubr.f32.mxu0 0.0
    %656 = vmatmul.mubr.f32.gmra.mrb[0].mxu0 %v51
    %v657 = vpop.f32.mrb[0].mxu0
    %v658 = vadd.f32 %v48, %v657
    %v659 = vpop.f32.mrb[0].mxu0
    %660 = vdwg.mxu0
    %vm661 = vcmp.gt.f32.partialorder %v126, 0.0
    %vm662 = vcmp.gt.f32.partialorder %v202, 0.0
    %vm663 = vcmp.gt.f32.partialorder %v278, 0.0
    %vm664 = vcmp.gt.f32.partialorder %v354, 0.0
    %vm665 = vcmp.gt.f32.partialorder %v430, 0.0
    %vm666 = vcmp.gt.f32.partialorder %v506, 0.0
    %vm667 = vcmp.gt.f32.partialorder %v582, 0.0
    %vm668 = vcmp.gt.f32.partialorder %v658, 0.0
    %v669 = vmul.f32 %v126, 0.01
    %v670 = vmul.f32 %v202, 0.01
    %v671 = vmul.f32 %v278, 0.01
    %v672 = vmul.f32 %v354, 0.01
    %v673 = vmul.f32 %v430, 0.01
    %v674 = vmul.f32 %v506, 0.01
    %v675 = vmul.f32 %v582, 0.01
    %v676 = vmul.f32 %v658, 0.01
    %v677 = vsel %vm661, %v126, %v669
    %v678 = vsel %vm662, %v202, %v670
    %v679 = vsel %vm663, %v278, %v671
    %v680 = vsel %vm664, %v354, %v672
    %v681 = vsel %vm665, %v430, %v673
    %v682 = vsel %vm666, %v506, %v674
    %v683 = vsel %vm667, %v582, %v675
    %v684 = vsel %vm668, %v658, %v676
    %v685 = vmul.f32 %v677, 1.442695
    %v686 = vpow.pop %v685
    %v687 = vmul.f32 %v678, 1.442695
    %v688 = vpow.pop %v687
    %v689 = vmul.f32 %v679, 1.442695
    %v690 = vpow.pop %v689
    %v691 = vmul.f32 %v680, 1.442695
    %v692 = vpow.pop %v691
    %v693 = vmul.f32 %v681, 1.442695
    %v694 = vpow.pop %v693
    %v695 = vmul.f32 %v682, 1.442695
    %v696 = vpow.pop %v695
    %v697 = vmul.f32 %v683, 1.442695
    %v698 = vpow.pop %v697
    %v699 = vmul.f32 %v684, 1.442695
    %v700 = vpow.pop %v699
    %vm701 = vcmask 130048
    %v703 = vsel %vm701, %v686, 0
    %705 = vmatprep.subr.mxu0 0.0
    %706 = vmatpush1.msra.mxu0 %v30
    %707 = vmatprep.subr.mxu0 0.0
    %708 = vmatpush1.msra.mxu0 %v31
    %709 = vmatprep.subr.mxu0 0.0
    %710 = vmatpush1.msra.mxu0 0.0
    %711 = vmatprep.subr.mxu0 0.0
    %712 = vmatpush1.msra.mxu0 0.0
    %713 = vmatprep.subr.mxu0 0.0
    %714 = vmatpush1.msra.mxu0 0.0
    %715 = vmatprep.subr.mxu0 0.0
    %716 = vmatpush1.msra.mxu0 0.0
    %717 = vmatprep.subr.mxu0 0.0
    %718 = vmatpush1.msra.mxu0 0.0
    %719 = vmatprep.subr.mxu0 0.0
    %720 = vmatpush1.msra.mxu0 0.0
    %721 = vmatprep.subr.mxu0 0.0
    %722 = vmatpush1.msra.mxu0 0.0
    %723 = vmatprep.subr.mxu0 0.0
    %724 = vmatpush1.msra.mxu0 0.0
    %725 = vmatprep.subr.mxu0 0.0
    %726 = vmatpush1.msra.mxu0 0.0
    %727 = vmatprep.subr.mxu0 0.0
    %728 = vmatpush1.msra.mxu0 0.0
    %729 = vmatprep.subr.mxu0 0.0
    %730 = vmatpush1.msra.mxu0 0.0
    %731 = vmatprep.subr.mxu0 0.0
    %732 = vmatpush1.msra.mxu0 0.0
    %733 = vmatprep.subr.mxu0 0.0
    %734 = vmatpush1.msra.mxu0 0.0
    %735 = vmatprep.subr.mxu0 0.0
    %736 = vmatpush1.msra.mxu0 0.0
    %737 = vmatprep.subr.mxu0 0.0
    %738 = vmatpush1.msra.mxu0 0.0
    %739 = vmatprep.subr.mxu0 0.0
    %740 = vmatpush1.msra.mxu0 0.0
    %741 = vmatprep.subr.mxu0 0.0
    %742 = vmatpush1.msra.mxu0 0.0
    %743 = vmatprep.subr.mxu0 0.0
    %744 = vmatpush1.msra.mxu0 0.0
    %745 = vmatprep.subr.mxu0 0.0
    %746 = vmatpush1.msra.mxu0 0.0
    %747 = vmatprep.subr.mxu0 0.0
    %748 = vmatpush1.msra.mxu0 0.0
    %749 = vmatprep.subr.mxu0 0.0
    %750 = vmatpush1.msra.mxu0 0.0
    %751 = vmatprep.subr.mxu0 0.0
    %752 = vmatpush1.msra.mxu0 0.0
    %753 = vmatprep.subr.mxu0 0.0
    %754 = vmatpush1.msra.mxu0 0.0
    %755 = vmatprep.subr.mxu0 0.0
    %756 = vmatpush1.msra.mxu0 0.0
    %757 = vmatprep.subr.mxu0 0.0
    %758 = vmatpush1.msra.mxu0 0.0
    %759 = vmatprep.subr.mxu0 0.0
    %760 = vmatpush1.msra.mxu0 0.0
    %761 = vmatprep.subr.mxu0 0.0
    %762 = vmatpush1.msra.mxu0 0.0
    %763 = vmatprep.subr.mxu0 0.0
    %764 = vmatpush1.msra.mxu0 0.0
    %765 = vmatprep.subr.mxu0 0.0
    %766 = vmatpush1.msra.mxu0 0.0
    %767 = vmatprep.subr.mxu0 0.0
    %768 = vmatpush1.msra.mxu0 0.0
    %769 = vmatprep.mubr.f32.mxu0 0.0
    %770 = vmatmul.mubr.f32.gmra.mrb[0].mxu0 %v703
    %v771 = vpop.f32.mrb[0].mxu0
    %v772 = vadd.f32 0.0, %v771
    %v773 = vpop.f32.mrb[0].mxu0
    %774 = vdwg.mxu0
    %v776 = vsel %vm701, %v688, 0
    %778 = vmatprep.subr.mxu0 0.0
    %779 = vmatpush1.msra.mxu0 %v32
    %780 = vmatprep.subr.mxu0 0.0
    %781 = vmatpush1.msra.mxu0 %v33
    %782 = vmatprep.subr.mxu0 0.0
    %783 = vmatpush1.msra.mxu0 0.0
    %784 = vmatprep.subr.mxu0 0.0
    %785 = vmatpush1.msra.mxu0 0.0
    %786 = vmatprep.subr.mxu0 0.0
    %787 = vmatpush1.msra.mxu0 0.0
    %788 = vmatprep.subr.mxu0 0.0
    %789 = vmatpush1.msra.mxu0 0.0
    %790 = vmatprep.subr.mxu0 0.0
    %791 = vmatpush1.msra.mxu0 0.0
    %792 = vmatprep.subr.mxu0 0.0
    %793 = vmatpush1.msra.mxu0 0.0
    %794 = vmatprep.subr.mxu0 0.0
    %795 = vmatpush1.msra.mxu0 0.0
    %796 = vmatprep.subr.mxu0 0.0
    %797 = vmatpush1.msra.mxu0 0.0
    %798 = vmatprep.subr.mxu0 0.0
    %799 = vmatpush1.msra.mxu0 0.0
    %800 = vmatprep.subr.mxu0 0.0
    %801 = vmatpush1.msra.mxu0 0.0
    %802 = vmatprep.subr.mxu0 0.0
    %803 = vmatpush1.msra.mxu0 0.0
    %804 = vmatprep.subr.mxu0 0.0
    %805 = vmatpush1.msra.mxu0 0.0
    %806 = vmatprep.subr.mxu0 0.0
    %807 = vmatpush1.msra.mxu0 0.0
    %808 = vmatprep.subr.mxu0 0.0
    %809 = vmatpush1.msra.mxu0 0.0
    %810 = vmatprep.subr.mxu0 0.0
    %811 = vmatpush1.msra.mxu0 0.0
    %812 = vmatprep.subr.mxu0 0.0
    %813 = vmatpush1.msra.mxu0 0.0
    %814 = vmatprep.subr.mxu0 0.0
    %815 = vmatpush1.msra.mxu0 0.0
    %816 = vmatprep.subr.mxu0 0.0
    %817 = vmatpush1.msra.mxu0 0.0
    %818 = vmatprep.subr.mxu0 0.0
    %819 = vmatpush1.msra.mxu0 0.0
    %820 = vmatprep.subr.mxu0 0.0
    %821 = vmatpush1.msra.mxu0 0.0
    %822 = vmatprep.subr.mxu0 0.0
    %823 = vmatpush1.msra.mxu0 0.0
    %824 = vmatprep.subr.mxu0 0.0
    %825 = vmatpush1.msra.mxu0 0.0
    %826 = vmatprep.subr.mxu0 0.0
    %827 = vmatpush1.msra.mxu0 0.0
    %828 = vmatprep.subr.mxu0 0.0
    %829 = vmatpush1.msra.mxu0 0.0
    %830 = vmatprep.subr.mxu0 0.0
    %831 = vmatpush1.msra.mxu0 0.0
    %832 = vmatprep.subr.mxu0 0.0
    %833 = vmatpush1.msra.mxu0 0.0
    %834 = vmatprep.subr.mxu0 0.0
    %835 = vmatpush1.msra.mxu0 0.0
    %836 = vmatprep.subr.mxu0 0.0
    %837 = vmatpush1.msra.mxu0 0.0
    %838 = vmatprep.subr.mxu0 0.0
    %839 = vmatpush1.msra.mxu0 0.0
    %840 = vmatprep.subr.mxu0 0.0
    %841 = vmatpush1.msra.mxu0 0.0
    %842 = vmatprep.mubr.f32.mxu0 0.0
    %843 = vmatmul.mubr.f32.gmra.mrb[0].mxu0 %v776
    %v844 = vpop.f32.mrb[0].mxu0
    %v845 = vadd.f32 0.0, %v844
    %v846 = vpop.f32.mrb[0].mxu0
    %847 = vdwg.mxu0
    %v849 = vsel %vm701, %v690, 0
    %851 = vmatprep.subr.mxu0 0.0
    %852 = vmatpush1.msra.mxu0 %v34
    %853 = vmatprep.subr.mxu0 0.0
    %854 = vmatpush1.msra.mxu0 %v35
    %855 = vmatprep.subr.mxu0 0.0
    %856 = vmatpush1.msra.mxu0 0.0
    %857 = vmatprep.subr.mxu0 0.0
    %858 = vmatpush1.msra.mxu0 0.0
    %859 = vmatprep.subr.mxu0 0.0
    %860 = vmatpush1.msra.mxu0 0.0
    %861 = vmatprep.subr.mxu0 0.0
    %862 = vmatpush1.msra.mxu0 0.0
    %863 = vmatprep.subr.mxu0 0.0
    %864 = vmatpush1.msra.mxu0 0.0
    %865 = vmatprep.subr.mxu0 0.0
    %866 = vmatpush1.msra.mxu0 0.0
    %867 = vmatprep.subr.mxu0 0.0
    %868 = vmatpush1.msra.mxu0 0.0
    %869 = vmatprep.subr.mxu0 0.0
    %870 = vmatpush1.msra.mxu0 0.0
    %871 = vmatprep.subr.mxu0 0.0
    %872 = vmatpush1.msra.mxu0 0.0
    %873 = vmatprep.subr.mxu0 0.0
    %874 = vmatpush1.msra.mxu0 0.0
    %875 = vmatprep.subr.mxu0 0.0
    %876 = vmatpush1.msra.mxu0 0.0
    %877 = vmatprep.subr.mxu0 0.0
    %878 = vmatpush1.msra.mxu0 0.0
    %879 = vmatprep.subr.mxu0 0.0
    %880 = vmatpush1.msra.mxu0 0.0
    %881 = vmatprep.subr.mxu0 0.0
    %882 = vmatpush1.msra.mxu0 0.0
    %883 = vmatprep.subr.mxu0 0.0
    %884 = vmatpush1.msra.mxu0 0.0
    %885 = vmatprep.subr.mxu0 0.0
    %886 = vmatpush1.msra.mxu0 0.0
    %887 = vmatprep.subr.mxu0 0.0
    %888 = vmatpush1.msra.mxu0 0.0
    %889 = vmatprep.subr.mxu0 0.0
    %890 = vmatpush1.msra.mxu0 0.0
    %891 = vmatprep.subr.mxu0 0.0
    %892 = vmatpush1.msra.mxu0 0.0
    %893 = vmatprep.subr.mxu0 0.0
    %894 = vmatpush1.msra.mxu0 0.0
    %895 = vmatprep.subr.mxu0 0.0
    %896 = vmatpush1.msra.mxu0 0.0
    %897 = vmatprep.subr.mxu0 0.0
    %898 = vmatpush1.msra.mxu0 0.0
    %899 = vmatprep.subr.mxu0 0.0
    %900 = vmatpush1.msra.mxu0 0.0
    %901 = vmatprep.subr.mxu0 0.0
    %902 = vmatpush1.msra.mxu0 0.0
    %903 = vmatprep.subr.mxu0 0.0
    %904 = vmatpush1.msra.mxu0 0.0
    %905 = vmatprep.subr.mxu0 0.0
    %906 = vmatpush1.msra.mxu0 0.0
    %907 = vmatprep.subr.mxu0 0.0
    %908 = vmatpush1.msra.mxu0 0.0
    %909 = vmatprep.subr.mxu0 0.0
    %910 = vmatpush1.msra.mxu0 0.0
    %911 = vmatprep.subr.mxu0 0.0
    %912 = vmatpush1.msra.mxu0 0.0
    %913 = vmatprep.subr.mxu0 0.0
    %914 = vmatpush1.msra.mxu0 0.0
    %915 = vmatprep.mubr.f32.mxu0 0.0
    %916 = vmatmul.mubr.f32.gmra.mrb[0].mxu0 %v849
    %v917 = vpop.f32.mrb[0].mxu0
    %v918 = vadd.f32 0.0, %v917
    %v919 = vpop.f32.mrb[0].mxu0
    %920 = vdwg.mxu0
    %v922 = vsel %vm701, %v692, 0
    %924 = vmatprep.subr.mxu0 0.0
    %925 = vmatpush1.msra.mxu0 %v36
    %926 = vmatprep.subr.mxu0 0.0
    %927 = vmatpush1.msra.mxu0 %v37
    %928 = vmatprep.subr.mxu0 0.0
    %929 = vmatpush1.msra.mxu0 0.0
    %930 = vmatprep.subr.mxu0 0.0
    %931 = vmatpush1.msra.mxu0 0.0
    %932 = vmatprep.subr.mxu0 0.0
    %933 = vmatpush1.msra.mxu0 0.0
    %934 = vmatprep.subr.mxu0 0.0
    %935 = vmatpush1.msra.mxu0 0.0
    %936 = vmatprep.subr.mxu0 0.0
    %937 = vmatpush1.msra.mxu0 0.0
    %938 = vmatprep.subr.mxu0 0.0
    %939 = vmatpush1.msra.mxu0 0.0
    %940 = vmatprep.subr.mxu0 0.0
    %941 = vmatpush1.msra.mxu0 0.0
    %942 = vmatprep.subr.mxu0 0.0
    %943 = vmatpush1.msra.mxu0 0.0
    %944 = vmatprep.subr.mxu0 0.0
    %945 = vmatpush1.msra.mxu0 0.0
    %946 = vmatprep.subr.mxu0 0.0
    %947 = vmatpush1.msra.mxu0 0.0
    %948 = vmatprep.subr.mxu0 0.0
    %949 = vmatpush1.msra.mxu0 0.0
    %950 = vmatprep.subr.mxu0 0.0
    %951 = vmatpush1.msra.mxu0 0.0
    %952 = vmatprep.subr.mxu0 0.0
    %953 = vmatpush1.msra.mxu0 0.0
    %954 = vmatprep.subr.mxu0 0.0
    %955 = vmatpush1.msra.mxu0 0.0
    %956 = vmatprep.subr.mxu0 0.0
    %957 = vmatpush1.msra.mxu0 0.0
    %958 = vmatprep.subr.mxu0 0.0
    %959 = vmatpush1.msra.mxu0 0.0
    %960 = vmatprep.subr.mxu0 0.0
    %961 = vmatpush1.msra.mxu0 0.0
    %962 = vmatprep.subr.mxu0 0.0
    %963 = vmatpush1.msra.mxu0 0.0
    %964 = vmatprep.subr.mxu0 0.0
    %965 = vmatpush1.msra.mxu0 0.0
    %966 = vmatprep.subr.mxu0 0.0
    %967 = vmatpush1.msra.mxu0 0.0
    %968 = vmatprep.subr.mxu0 0.0
    %969 = vmatpush1.msra.mxu0 0.0
    %970 = vmatprep.subr.mxu0 0.0
    %971 = vmatpush1.msra.mxu0 0.0
    %972 = vmatprep.subr.mxu0 0.0
    %973 = vmatpush1.msra.mxu0 0.0
    %974 = vmatprep.subr.mxu0 0.0
    %975 = vmatpush1.msra.mxu0 0.0
    %976 = vmatprep.subr.mxu0 0.0
    %977 = vmatpush1.msra.mxu0 0.0
    %978 = vmatprep.subr.mxu0 0.0
    %979 = vmatpush1.msra.mxu0 0.0
    %980 = vmatprep.subr.mxu0 0.0
    %981 = vmatpush1.msra.mxu0 0.0
    %982 = vmatprep.subr.mxu0 0.0
    %983 = vmatpush1.msra.mxu0 0.0
    %984 = vmatprep.subr.mxu0 0.0
    %985 = vmatpush1.msra.mxu0 0.0
    %986 = vmatprep.subr.mxu0 0.0
    %987 = vmatpush1.msra.mxu0 0.0
    %988 = vmatprep.mubr.f32.mxu0 0.0
    %989 = vmatmul.mubr.f32.gmra.mrb[0].mxu0 %v922
    %v990 = vpop.f32.mrb[0].mxu0
    %v991 = vadd.f32 0.0, %v990
    %v992 = vpop.f32.mrb[0].mxu0
    %993 = vdwg.mxu0
    %v995 = vsel %vm701, %v694, 0
    %997 = vmatprep.subr.mxu0 0.0
    %998 = vmatpush1.msra.mxu0 %v38
    %999 = vmatprep.subr.mxu0 0.0
    %1000 = vmatpush1.msra.mxu0 %v39
    %1001 = vmatprep.subr.mxu0 0.0
    %1002 = vmatpush1.msra.mxu0 0.0
    %1003 = vmatprep.subr.mxu0 0.0
    %1004 = vmatpush1.msra.mxu0 0.0
    %1005 = vmatprep.subr.mxu0 0.0
    %1006 = vmatpush1.msra.mxu0 0.0
    %1007 = vmatprep.subr.mxu0 0.0
    %1008 = vmatpush1.msra.mxu0 0.0
    %1009 = vmatprep.subr.mxu0 0.0
    %1010 = vmatpush1.msra.mxu0 0.0
    %1011 = vmatprep.subr.mxu0 0.0
    %1012 = vmatpush1.msra.mxu0 0.0
    %1013 = vmatprep.subr.mxu0 0.0
    %1014 = vmatpush1.msra.mxu0 0.0
    %1015 = vmatprep.subr.mxu0 0.0
    %1016 = vmatpush1.msra.mxu0 0.0
    %1017 = vmatprep.subr.mxu0 0.0
    %1018 = vmatpush1.msra.mxu0 0.0
    %1019 = vmatprep.subr.mxu0 0.0
    %1020 = vmatpush1.msra.mxu0 0.0
    %1021 = vmatprep.subr.mxu0 0.0
    %1022 = vmatpush1.msra.mxu0 0.0
    %1023 = vmatprep.subr.mxu0 0.0
    %1024 = vmatpush1.msra.mxu0 0.0
    %1025 = vmatprep.subr.mxu0 0.0
    %1026 = vmatpush1.msra.mxu0 0.0
    %1027 = vmatprep.subr.mxu0 0.0
    %1028 = vmatpush1.msra.mxu0 0.0
    %1029 = vmatprep.subr.mxu0 0.0
    %1030 = vmatpush1.msra.mxu0 0.0
    %1031 = vmatprep.subr.mxu0 0.0
    %1032 = vmatpush1.msra.mxu0 0.0
    %1033 = vmatprep.subr.mxu0 0.0
    %1034 = vmatpush1.msra.mxu0 0.0
    %1035 = vmatprep.subr.mxu0 0.0
    %1036 = vmatpush1.msra.mxu0 0.0
    %1037 = vmatprep.subr.mxu0 0.0
    %1038 = vmatpush1.msra.mxu0 0.0
    %1039 = vmatprep.subr.mxu0 0.0
    %1040 = vmatpush1.msra.mxu0 0.0
    %1041 = vmatprep.subr.mxu0 0.0
    %1042 = vmatpush1.msra.mxu0 0.0
    %1043 = vmatprep.subr.mxu0 0.0
    %1044 = vmatpush1.msra.mxu0 0.0
    %1045 = vmatprep.subr.mxu0 0.0
    %1046 = vmatpush1.msra.mxu0 0.0
    %1047 = vmatprep.subr.mxu0 0.0
    %1048 = vmatpush1.msra.mxu0 0.0
    %1049 = vmatprep.subr.mxu0 0.0
    %1050 = vmatpush1.msra.mxu0 0.0
    %1051 = vmatprep.subr.mxu0 0.0
    %1052 = vmatpush1.msra.mxu0 0.0
    %1053 = vmatprep.subr.mxu0 0.0
    %1054 = vmatpush1.msra.mxu0 0.0
    %1055 = vmatprep.subr.mxu0 0.0
    %1056 = vmatpush1.msra.mxu0 0.0
    %1057 = vmatprep.subr.mxu0 0.0
    %1058 = vmatpush1.msra.mxu0 0.0
    %1059 = vmatprep.subr.mxu0 0.0
    %1060 = vmatpush1.msra.mxu0 0.0
    %1061 = vmatprep.mubr.f32.mxu0 0.0
    %1062 = vmatmul.mubr.f32.gmra.mrb[0].mxu0 %v995
    %v1063 = vpop.f32.mrb[0].mxu0
    %v1064 = vadd.f32 0.0, %v1063
    %v1065 = vpop.f32.mrb[0].mxu0
    %1066 = vdwg.mxu0
    %v1068 = vsel %vm701, %v696, 0
    %1070 = vmatprep.subr.mxu0 0.0
    %1071 = vmatpush1.msra.mxu0 %v40
    %1072 = vmatprep.subr.mxu0 0.0
    %1073 = vmatpush1.msra.mxu0 %v41
    %1074 = vmatprep.subr.mxu0 0.0
    %1075 = vmatpush1.msra.mxu0 0.0
    %1076 = vmatprep.subr.mxu0 0.0
    %1077 = vmatpush1.msra.mxu0 0.0
    %1078 = vmatprep.subr.mxu0 0.0
    %1079 = vmatpush1.msra.mxu0 0.0
    %1080 = vmatprep.subr.mxu0 0.0
    %1081 = vmatpush1.msra.mxu0 0.0
    %1082 = vmatprep.subr.mxu0 0.0
    %1083 = vmatpush1.msra.mxu0 0.0
    %1084 = vmatprep.subr.mxu0 0.0
    %1085 = vmatpush1.msra.mxu0 0.0
    %1086 = vmatprep.subr.mxu0 0.0
    %1087 = vmatpush1.msra.mxu0 0.0
    %1088 = vmatprep.subr.mxu0 0.0
    %1089 = vmatpush1.msra.mxu0 0.0
    %1090 = vmatprep.subr.mxu0 0.0
    %1091 = vmatpush1.msra.mxu0 0.0
    %1092 = vmatprep.subr.mxu0 0.0
    %1093 = vmatpush1.msra.mxu0 0.0
    %1094 = vmatprep.subr.mxu0 0.0
    %1095 = vmatpush1.msra.mxu0 0.0
    %1096 = vmatprep.subr.mxu0 0.0
    %1097 = vmatpush1.msra.mxu0 0.0
    %1098 = vmatprep.subr.mxu0 0.0
    %1099 = vmatpush1.msra.mxu0 0.0
    %1100 = vmatprep.subr.mxu0 0.0
    %1101 = vmatpush1.msra.mxu0 0.0
    %1102 = vmatprep.subr.mxu0 0.0
    %1103 = vmatpush1.msra.mxu0 0.0
    %1104 = vmatprep.subr.mxu0 0.0
    %1105 = vmatpush1.msra.mxu0 0.0
    %1106 = vmatprep.subr.mxu0 0.0
    %1107 = vmatpush1.msra.mxu0 0.0
    %1108 = vmatprep.subr.mxu0 0.0
    %1109 = vmatpush1.msra.mxu0 0.0
    %1110 = vmatprep.subr.mxu0 0.0
    %1111 = vmatpush1.msra.mxu0 0.0
    %1112 = vmatprep.subr.mxu0 0.0
    %1113 = vmatpush1.msra.mxu0 0.0
    %1114 = vmatprep.subr.mxu0 0.0
    %1115 = vmatpush1.msra.mxu0 0.0
    %1116 = vmatprep.subr.mxu0 0.0
    %1117 = vmatpush1.msra.mxu0 0.0
    %1118 = vmatprep.subr.mxu0 0.0
    %1119 = vmatpush1.msra.mxu0 0.0
    %1120 = vmatprep.subr.mxu0 0.0
    %1121 = vmatpush1.msra.mxu0 0.0
    %1122 = vmatprep.subr.mxu0 0.0
    %1123 = vmatpush1.msra.mxu0 0.0
    %1124 = vmatprep.subr.mxu0 0.0
    %1125 = vmatpush1.msra.mxu0 0.0
    %1126 = vmatprep.subr.mxu0 0.0
    %1127 = vmatpush1.msra.mxu0 0.0
    %1128 = vmatprep.subr.mxu0 0.0
    %1129 = vmatpush1.msra.mxu0 0.0
    %1130 = vmatprep.subr.mxu0 0.0
    %1131 = vmatpush1.msra.mxu0 0.0
    %1132 = vmatprep.subr.mxu0 0.0
    %1133 = vmatpush1.msra.mxu0 0.0
    %1134 = vmatprep.mubr.f32.mxu0 0.0
    %1135 = vmatmul.mubr.f32.gmra.mrb[0].mxu0 %v1068
    %v1136 = vpop.f32.mrb[0].mxu0
    %v1137 = vadd.f32 0.0, %v1136
    %v1138 = vpop.f32.mrb[0].mxu0
    %1139 = vdwg.mxu0
    %v1141 = vsel %vm701, %v698, 0
    %1143 = vmatprep.subr.mxu0 0.0
    %1144 = vmatpush1.msra.mxu0 %v42
    %1145 = vmatprep.subr.mxu0 0.0
    %1146 = vmatpush1.msra.mxu0 %v43
    %1147 = vmatprep.subr.mxu0 0.0
    %1148 = vmatpush1.msra.mxu0 0.0
    %1149 = vmatprep.subr.mxu0 0.0
    %1150 = vmatpush1.msra.mxu0 0.0
    %1151 = vmatprep.subr.mxu0 0.0
    %1152 = vmatpush1.msra.mxu0 0.0
    %1153 = vmatprep.subr.mxu0 0.0
    %1154 = vmatpush1.msra.mxu0 0.0
    %1155 = vmatprep.subr.mxu0 0.0
    %1156 = vmatpush1.msra.mxu0 0.0
    %1157 = vmatprep.subr.mxu0 0.0
    %1158 = vmatpush1.msra.mxu0 0.0
    %1159 = vmatprep.subr.mxu0 0.0
    %1160 = vmatpush1.msra.mxu0 0.0
    %1161 = vmatprep.subr.mxu0 0.0
    %1162 = vmatpush1.msra.mxu0 0.0
    %1163 = vmatprep.subr.mxu0 0.0
    %1164 = vmatpush1.msra.mxu0 0.0
    %1165 = vmatprep.subr.mxu0 0.0
    %1166 = vmatpush1.msra.mxu0 0.0
    %1167 = vmatprep.subr.mxu0 0.0
    %1168 = vmatpush1.msra.mxu0 0.0
    %1169 = vmatprep.subr.mxu0 0.0
    %1170 = vmatpush1.msra.mxu0 0.0
    %1171 = vmatprep.subr.mxu0 0.0
    %1172 = vmatpush1.msra.mxu0 0.0
    %1173 = vmatprep.subr.mxu0 0.0
    %1174 = vmatpush1.msra.mxu0 0.0
    %1175 = vmatprep.subr.mxu0 0.0
    %1176 = vmatpush1.msra.mxu0 0.0
    %1177 = vmatprep.subr.mxu0 0.0
    %1178 = vmatpush1.msra.mxu0 0.0
    %1179 = vmatprep.subr.mxu0 0.0
    %1180 = vmatpush1.msra.mxu0 0.0
    %1181 = vmatprep.subr.mxu0 0.0
    %1182 = vmatpush1.msra.mxu0 0.0
    %1183 = vmatprep.subr.mxu0 0.0
    %1184 = vmatpush1.msra.mxu0 0.0
    %1185 = vmatprep.subr.mxu0 0.0
    %1186 = vmatpush1.msra.mxu0 0.0
    %1187 = vmatprep.subr.mxu0 0.0
    %1188 = vmatpush1.msra.mxu0 0.0
    %1189 = vmatprep.subr.mxu0 0.0
    %1190 = vmatpush1.msra.mxu0 0.0
    %1191 = vmatprep.subr.mxu0 0.0
    %1192 = vmatpush1.msra.mxu0 0.0
    %1193 = vmatprep.subr.mxu0 0.0
    %1194 = vmatpush1.msra.mxu0 0.0
    %1195 = vmatprep.subr.mxu0 0.0
    %1196 = vmatpush1.msra.mxu0 0.0
    %1197 = vmatprep.subr.mxu0 0.0
    %1198 = vmatpush1.msra.mxu0 0.0
    %1199 = vmatprep.subr.mxu0 0.0
    %1200 = vmatpush1.msra.mxu0 0.0
    %1201 = vmatprep.subr.mxu0 0.0
    %1202 = vmatpush1.msra.mxu0 0.0
    %1203 = vmatprep.subr.mxu0 0.0
    %1204 = vmatpush1.msra.mxu0 0.0
    %1205 = vmatprep.subr.mxu0 0.0
    %1206 = vmatpush1.msra.mxu0 0.0
    %1207 = vmatprep.mubr.f32.mxu0 0.0
    %1208 = vmatmul.mubr.f32.gmra.mrb[0].mxu0 %v1141
    %v1209 = vpop.f32.mrb[0].mxu0
    %v1210 = vadd.f32 0.0, %v1209
    %v1211 = vpop.f32.mrb[0].mxu0
    %1212 = vdwg.mxu0
    %v1214 = vsel %vm701, %v700, 0
    %1216 = vmatprep.subr.mxu0 0.0
    %1217 = vmatpush1.msra.mxu0 %v44
    %1218 = vmatprep.subr.mxu0 0.0
    %1219 = vmatpush1.msra.mxu0 %v45
    %1220 = vmatprep.subr.mxu0 0.0
    %1221 = vmatpush1.msra.mxu0 0.0
    %1222 = vmatprep.subr.mxu0 0.0
    %1223 = vmatpush1.msra.mxu0 0.0
    %1224 = vmatprep.subr.mxu0 0.0
    %1225 = vmatpush1.msra.mxu0 0.0
    %1226 = vmatprep.subr.mxu0 0.0
    %1227 = vmatpush1.msra.mxu0 0.0
    %1228 = vmatprep.subr.mxu0 0.0
    %1229 = vmatpush1.msra.mxu0 0.0
    %1230 = vmatprep.subr.mxu0 0.0
    %1231 = vmatpush1.msra.mxu0 0.0
    %1232 = vmatprep.subr.mxu0 0.0
    %1233 = vmatpush1.msra.mxu0 0.0
    %1234 = vmatprep.subr.mxu0 0.0
    %1235 = vmatpush1.msra.mxu0 0.0
    %1236 = vmatprep.subr.mxu0 0.0
    %1237 = vmatpush1.msra.mxu0 0.0
    %1238 = vmatprep.subr.mxu0 0.0
    %1239 = vmatpush1.msra.mxu0 0.0
    %1240 = vmatprep.subr.mxu0 0.0
    %1241 = vmatpush1.msra.mxu0 0.0
    %1242 = vmatprep.subr.mxu0 0.0
    %1243 = vmatpush1.msra.mxu0 0.0
    %1244 = vmatprep.subr.mxu0 0.0
    %1245 = vmatpush1.msra.mxu0 0.0
    %1246 = vmatprep.subr.mxu0 0.0
    %1247 = vmatpush1.msra.mxu0 0.0
    %1248 = vmatprep.subr.mxu0 0.0
    %1249 = vmatpush1.msra.mxu0 0.0
    %1250 = vmatprep.subr.mxu0 0.0
    %1251 = vmatpush1.msra.mxu0 0.0
    %1252 = vmatprep.subr.mxu0 0.0
    %1253 = vmatpush1.msra.mxu0 0.0
    %1254 = vmatprep.subr.mxu0 0.0
    %1255 = vmatpush1.msra.mxu0 0.0
    %1256 = vmatprep.subr.mxu0 0.0
    %1257 = vmatpush1.msra.mxu0 0.0
    %1258 = vmatprep.subr.mxu0 0.0
    %1259 = vmatpush1.msra.mxu0 0.0
    %1260 = vmatprep.subr.mxu0 0.0
    %1261 = vmatpush1.msra.mxu0 0.0
    %1262 = vmatprep.subr.mxu0 0.0
    %1263 = vmatpush1.msra.mxu0 0.0
    %1264 = vmatprep.subr.mxu0 0.0
    %1265 = vmatpush1.msra.mxu0 0.0
    %1266 = vmatprep.subr.mxu0 0.0
    %1267 = vmatpush1.msra.mxu0 0.0
    %1268 = vmatprep.subr.mxu0 0.0
    %1269 = vmatpush1.msra.mxu0 0.0
    %1270 = vmatprep.subr.mxu0 0.0
    %1271 = vmatpush1.msra.mxu0 0.0
    %1272 = vmatprep.subr.mxu0 0.0
    %1273 = vmatpush1.msra.mxu0 0.0
    %1274 = vmatprep.subr.mxu0 0.0
    %1275 = vmatpush1.msra.mxu0 0.0
    %1276 = vmatprep.subr.mxu0 0.0
    %1277 = vmatpush1.msra.mxu0 0.0
    %1278 = vmatprep.subr.mxu0 0.0
    %1279 = vmatpush1.msra.mxu0 0.0
    %1280 = vmatprep.mubr.f32.mxu0 0.0
    %1281 = vmatmul.mubr.f32.gmra.mrb[0].mxu0 %v1214
    %v1282 = vpop.f32.mrb[0].mxu0
    %v1283 = vadd.f32 0.0, %v1282
    %v1284 = vpop.f32.mrb[0].mxu0
    %1285 = vdwg.mxu0
    %v1286 = vmul.f32 %v772, 0.1
    %v1287 = vmul.f32 %v845, 0.1
    %v1288 = vmul.f32 %v918, 0.1
    %v1289 = vmul.f32 %v991, 0.1
    %v1290 = vmul.f32 %v1064, 0.1
    %v1291 = vmul.f32 %v1137, 0.1
    %v1292 = vmul.f32 %v1210, 0.1
    %v1293 = vmul.f32 %v1283, 0.1
    %vm1294 = vcmask 253952
    %1295 = vst.msk [vmem:[#allocation6] sm:$0x1] %vm1294, %v1286
    %1296 = vst.msk [vmem:[#allocation6 + $0x1] sm:$0x1] %vm1294, %v1287
    %1297 = vst.msk [vmem:[#allocation6 + $0x2] sm:$0x1] %vm1294, %v1288
    %1298 = vst.msk [vmem:[#allocation6 + $0x3] sm:$0x1] %vm1294, %v1289
    %1299 = vst.msk [vmem:[#allocation6 + $0x4] sm:$0x1] %vm1294, %v1290
    %1300 = vst.msk [vmem:[#allocation6 + $0x5] sm:$0x1] %vm1294, %v1291
    %1301 = vst.msk [vmem:[#allocation6 + $0x6] sm:$0x1] %vm1294, %v1292
    %1302 = vst.msk [vmem:[#allocation6 + $0x7] sm:$0x1] %vm1294, %v1293
    // Predicated region
    $region18: #{tpu_custom_call.1} parent=1 // pred_check
      _
    $region19: #{tpu_custom_call.1} parent=1 // pred_check_branch
      %1304 = sbr.rel (0) target = $region21
    $region20: #{tpu_custom_call.1} parent=1 // pred_region
      %s1306 = ssub.s32 128, 128
      %1307 = vsyncadd [#allocation5], %s1306
      %s1308 = sshll.u32 [#allocation6], 4
      %s1309 = int_to_ptr.vmem [resolvable:$true] %s1308
      %1314 = dma.vmem_to_hbm [thread:$0]  %s1309, 128, %s3, [#allocation5], 16, 16, 1
    $region21: #{tpu_custom_call.1} parent=1 // pred_fallthru
      _
    // Predicated region
    $region22: #{tpu_custom_call.1} parent=1 // pred_check
      _
    $region23: #{tpu_custom_call.1} parent=1 // pred_check_branch
      %1316 = sbr.rel (0) target = $region25
    $region24: #{tpu_custom_call.1} parent=1 // pred_region
      %1317 = dma.done [#allocation5], 128
    $region25: #{tpu_custom_call.1} parent=1 // pred_fallthru
      _
    %1318 = vsyncpa [#allocation4], 1
    %1319 = vsyncpa [#allocation5], 1

</llo_original>
